<compile_context>
chip_gen: v5e
topology: v5e:2x2
jax: 0.10.0
libtpu: 0.0.40
codegen_flags: <defaults>
</compile_context>

<pallas_src>
import functools
import math

import jax
import jax.numpy as jnp
from jax.experimental import pallas as pl
from jax.experimental.pallas import tpu as pltpu


_N_TILE_CANDIDATES = (512, 256, 128)
_B_TILE_CANDIDATES = (256, 128, 64, 32, 16, 8)
_ASSUMED_MAX_TILE_B = 256        # used only for the (batch-independent) K plan
_K_TILE_BUDGET = 16 << 20        # double-buffered x+w tiles stay under this


def _round_up(x, m):
    return ((x + m - 1) // m) * m


def _plan_n(out_dim):
    """Padded out dim (multiple of 128) and the base lane-dense N tile."""
    out_pad = _round_up(out_dim, 128)
    for cand in _N_TILE_CANDIDATES:
        if out_pad % cand == 0:
            return out_pad, cand
    return out_pad, 128


def _plan_k(k_dim, tile_n_base, itemsize):
    """(tile_k, K_pad) so double-buffered x+w tiles fit _K_TILE_BUDGET.

    Depends only on (k_dim, tile_n_base, itemsize) so prepare_output_layer and
    output_layer_forward_prepared always agree on the padded K layout.
    """
    bytes_per_k = 2 * (_ASSUMED_MAX_TILE_B + tile_n_base) * itemsize
    raw = _K_TILE_BUDGET // bytes_per_k
    if k_dim <= raw:
        return k_dim, k_dim                      # full K, no reduction axis
    tile_k = max(128, (raw // 128) * 128)
    return tile_k, _round_up(k_dim, tile_k)


def _choose_tile_b(batch, min_tile):
    """Largest batch tile whose padding waste is modest (<= 30%)."""
    for cand in _B_TILE_CANDIDATES:
        if cand < min_tile:
            break
        b_pad = _round_up(batch, cand)
        if (b_pad - batch) / b_pad <= 0.30:
            return cand
    return min_tile


def _sigmoid(y, approx):
    if approx:
        # exp goes to the EUP; approximate reciprocal also lands on the EUP
        # slot instead of a VPU f32 divide (epilogue-bound small-K case).
        return pl.reciprocal(1.0 + jnp.exp(-y), approx=True)
    return jax.nn.sigmoid(y)


def _fwd_kernel_noacc(x_ref, w_ref, b_ref, o_ref, *, approx):
    # x_ref: (TB, K)  w_ref: (K, TN)  b_ref: (1, TN)  o_ref: (TB, TN)
    y = jax.lax.dot_general(
        x_ref[...], w_ref[...],
        dimension_numbers=(((1,), (0,)), ((), ())),
        preferred_element_type=jnp.float32)          # f32 MXU accumulation
    y = y + b_ref[...].astype(jnp.float32)
    o_ref[...] = _sigmoid(y, approx).astype(o_ref.dtype)


def _fwd_kernel_acc(x_ref, w_ref, b_ref, o_ref, acc_ref, *, approx):
    # K-tiled variant: grid = (N, B, K), K innermost ("arbitrary").
    k = pl.program_id(2)

    @pl.when(k == 0)
    def _():
        acc_ref[...] = jnp.zeros_like(acc_ref)

    acc_ref[...] += jax.lax.dot_general(
        x_ref[...], w_ref[...],
        dimension_numbers=(((1,), (0,)), ((), ())),
        preferred_element_type=jnp.float32)

    @pl.when(k == pl.num_programs(2) - 1)
    def _():
        y = acc_ref[...] + b_ref[...].astype(jnp.float32)
        o_ref[...] = _sigmoid(y, approx).astype(o_ref.dtype)


def prepare_output_layer(weight, bias, *, use_bf16=True):
    """One-time weight/bias preprocessing (hoisted off the per-call hot path).

    weight: (out_features, in_features)  -- torch F.linear layout
    bias:   (out_features,)
    Returns:
      w_t: (K_pad, out_pad) compute-dtype weight, K on sublanes (MXU RHS)
      b2:  (1, out_pad) float32 bias row
    """
    out_features, in_features = weight.shape
    compute_dtype = jnp.bfloat16 if use_bf16 else jnp.float32
    itemsize = jnp.dtype(compute_dtype).itemsize

    out_pad, tile_n_base = _plan_n(out_features)
    _, k_pad = _plan_k(in_features, tile_n_base, itemsize)

    w = jnp.asarray(weight, jnp.float32)
    b = jnp.asarray(bias, jnp.float32)
    w_t = jnp.pad(w, ((0, out_pad - out_features), (0, k_pad - in_features)))
    w_t = w_t.T.astype(compute_dtype)                      # (K_pad, out_pad)
    b2 = jnp.pad(b, (0, out_pad - out_features)).reshape(1, out_pad)
    return w_t, b2


@functools.partial(jax.jit, static_argnames=("out_features", "approx_sigmoid"))
def output_layer_forward_prepared(x, w_t, b2, *, out_features,
                                  approx_sigmoid=None):
    """sigmoid(x @ W.T + b) with preprocessed weight from prepare_output_layer."""
    B, in_features = x.shape
    k_pad, out_pad = w_t.shape
    assert b2.shape == (1, out_pad)
    assert in_features <= k_pad, "x in_features larger than prepared weight K"

    compute_dtype = w_t.dtype
    use_bf16 = compute_dtype == jnp.bfloat16
    if approx_sigmoid is None:
        approx_sigmoid = bool(use_bf16)
    itemsize = jnp.dtype(compute_dtype).itemsize

    # ---- tiling plan (static; must agree with prepare_output_layer) ----
    _, tile_n_base = _plan_n(out_pad)
    tile_k, k_pad_chk = _plan_k(k_pad, tile_n_base, itemsize)
    assert k_pad_chk == k_pad, "weight was not prepared with prepare_output_layer"
    n_k = k_pad // tile_k

    min_tile_b = 16 if use_bf16 else 8
    tile_b = _choose_tile_b(B, min_tile_b)
    B_pad = _round_up(B, tile_b)

    tile_n = tile_n_base
    n_n = out_pad // tile_n
    n_b = B_pad // tile_b
    # v7x megacore: try to give both TensorCores work when the grid is (1,1).
    if n_n * n_b == 1:
        if tile_n > 128 and out_pad % (tile_n // 2) == 0:
            tile_n //= 2
        elif tile_b // 2 >= min_tile_b:
            tile_b //= 2
            B_pad = _round_up(B, tile_b)
        n_n = out_pad // tile_n
        n_b = B_pad // tile_b

    # Pad / cast activations (only per-call data movement besides the kernel).
    x_p = jnp.pad(x.astype(compute_dtype),
                  ((0, B_pad - B), (0, k_pad - in_features)))

    # ---- VMEM budget: tile footprint, capped by this generation's VMEM ----
    try:
        vmem_cap = int(pltpu.get_tpu_info().vmem_capacity_bytes)
    except Exception:
        vmem_cap = 128 << 20
    needed = (2 * (tile_b * tile_k + tile_k * tile_n) * itemsize  # x, w dbl-buf
              + 2 * tile_b * tile_n * 4                           # out dbl-buf
              + 2 * tile_n * 4                                    # bias
              + (tile_b * tile_n * 4 if n_k > 1 else 0)           # accumulator
              + (4 << 20))                                        # headroom
    vmem_limit = int(min(max(needed, 32 << 20), int(vmem_cap * 0.78)))

    # Advisory cost estimate reflecting the actual streaming pattern.
    w_bytes = w_t.size * itemsize * (n_b if n_k > 1 else 1)
    x_bytes = B_pad * k_pad * itemsize * n_n
    cost = pl.CostEstimate(
        flops=2 * B_pad * k_pad * out_pad,
        transcendentals=B_pad * out_pad,
        bytes_accessed=int(w_bytes + x_bytes + b2.size * 4 + B_pad * out_pad * 4),
    )

    if n_k == 1:
        kernel = functools.partial(_fwd_kernel_noacc, approx=approx_sigmoid)
        grid = (n_n, n_b)
        in_specs = [
            # activation: full K, batch-tiled (changes every inner step)
            pl.BlockSpec((tile_b, k_pad), lambda n, b: (b, 0)),
            # weight column-tile: constant across inner b sweep -> DMA'd once
            pl.BlockSpec((k_pad, tile_n), lambda n, b: (0, n)),
            # bias: fetched only when the outer N tile changes
            pl.BlockSpec((1, tile_n), lambda n, b: (0, n)),
        ]
        out_spec = pl.BlockSpec((tile_b, tile_n), lambda n, b: (b, n))
        scratch = []
        dims = ("parallel", "parallel")
    else:
        kernel = functools.partial(_fwd_kernel_acc, approx=approx_sigmoid)
        grid = (n_n, n_b, n_k)
        in_specs = [
            pl.BlockSpec((tile_b, tile_k), lambda n, b, k: (b, k)),
            pl.BlockSpec((tile_k, tile_n), lambda n, b, k: (k, n)),
            pl.BlockSpec((1, tile_n), lambda n, b, k: (0, n)),
        ]
        out_spec = pl.BlockSpec((tile_b, tile_n), lambda n, b, k: (b, n))
        scratch = [pltpu.VMEM((tile_b, tile_n), jnp.float32)]
        dims = ("parallel", "parallel", "arbitrary")

    out_p = pl.pallas_call(
        kernel,
        out_shape=jax.ShapeDtypeStruct((B_pad, out_pad), jnp.float32),
        grid_spec=pltpu.PrefetchScalarGridSpec(
            num_scalar_prefetch=0,
            grid=grid,
            in_specs=in_specs,
            out_specs=out_spec,
            scratch_shapes=scratch,
        ),
        compiler_params=pltpu.CompilerParams(
            dimension_semantics=dims,
            vmem_limit_bytes=vmem_limit,
        ),
        cost_estimate=cost,
    )(x_p, w_t, b2)

    # Strip padding.
    return out_p[:B, :out_features]


def output_layer_forward(x, weight, bias, *, use_bf16=True, approx_sigmoid=None):
    """Convenience one-shot wrapper.  For repeated calls with the same weights,
    call prepare_output_layer once and reuse output_layer_forward_prepared."""
    w_t, b2 = prepare_output_layer(weight, bias, use_bf16=use_bf16)
    return output_layer_forward_prepared(
        x, w_t, b2, out_features=weight.shape[0], approx_sigmoid=approx_sigmoid)


def reference_forward(x, weight, bias):
    return jax.nn.sigmoid(x @ weight.T + bias)


if __name__ == "__main__":
    # Small, module-consistent shapes; ragged batch and non-multiple-of-128
    # out_features exercise the padding paths.
    B, in_features, out_features = 10, 32, 48
    key = jax.random.PRNGKey(0)
    kx, kw, kb = jax.random.split(key, 3)

    x = jax.random.normal(kx, (B, in_features), dtype=jnp.float32)
    bound = 1.0 / math.sqrt(in_features)
    weight = jax.random.uniform(
        kw, (out_features, in_features), minval=-bound, maxval=bound,
        dtype=jnp.float32)
    bias = jax.random.uniform(
        kb, (out_features,), minval=-bound, maxval=bound, dtype=jnp.float32)

    ref = reference_forward(x, weight, bias)

    # Default fast path: bf16 MXU operands, f32 accumulation + epilogue,
    # weight prep hoisted out of the per-call hot path (done once, reused).
    w_t, b2 = prepare_output_layer(weight, bias, use_bf16=True)
    out = output_layer_forward_prepared(x, w_t, b2, out_features=out_features)
    out = jax.block_until_ready(out)
    assert out.shape == (B, out_features)
    assert jnp.allclose(out, ref, atol=2e-2, rtol=2e-2), "bf16 path mismatch"

    # Exact f32 path: tight tolerance against the reference.
    out32 = output_layer_forward(x, weight, bias, use_bf16=False)
    out32 = jax.block_until_ready(out32)
    assert out32.shape == (B, out_features)
    assert jnp.allclose(out32, ref, atol=1e-5, rtol=1e-5), "f32 path mismatch"

    # TODO(synk): backward / update_weights are host-driven feedback-alignment
    # training routines (manual deltas + SGD); only forward() is a kernel here.

    print("KERNEL_OK")
</pallas_src>

<mosaic_0001>
module attributes {stable_mosaic.version = 11 : i64} {
  func.func @_fwd_kernel_noacc(%arg0: i32, %arg1: i32, %arg2: memref<16x32xbf16, #tpu.memory_space<vmem>>, %arg3: memref<32x128xbf16, #tpu.memory_space<vmem>>, %arg4: memref<1x128xf32, #tpu.memory_space<vmem>>, %arg5: memref<16x128xf32, #tpu.memory_space<vmem>>) attributes {dimension_semantics = [#tpu.dimension_semantics<parallel>, #tpu.dimension_semantics<parallel>], iteration_bounds = array<i64: 1, 1>, scalar_prefetch = 0 : i64, scratch_operands = 0 : i64, tpu.core_type = #tpu.core_type<tc>, window_params = [{transform_indices = @transform_0, window_bounds = array<i64: 16, 32>}, {transform_indices = @transform_1, window_bounds = array<i64: 32, 128>}, {transform_indices = @transform_2, window_bounds = array<i64: 1, 128>}, {transform_indices = @transform_3, window_bounds = array<i64: 16, 128>}]} {
    %c0 = arith.constant 0 : index
    %c0_0 = arith.constant 0 : index
    %0 = vector.load %arg2[%c0, %c0_0] : memref<16x32xbf16, #tpu.memory_space<vmem>>, vector<16x32xbf16>
    %c0_1 = arith.constant 0 : index
    %c0_2 = arith.constant 0 : index
    %1 = vector.load %arg3[%c0_1, %c0_2] : memref<32x128xbf16, #tpu.memory_space<vmem>>, vector<32x128xbf16>
    %cst = arith.constant dense<0.000000e+00> : vector<16x128xf32>
    %2 = tpu.matmul %0, %1, %cst {dimension_numbers = #tpu.dot_dimension_numbers<[1], [0], [0], [1], [0, 0, 1, 1], [], []>} : vector<16x32xbf16>, vector<32x128xbf16>, vector<16x128xf32> -> vector<16x128xf32>
    %c0_3 = arith.constant 0 : index
    %c0_4 = arith.constant 0 : index
    %3 = vector.load %arg4[%c0_3, %c0_4] : memref<1x128xf32, #tpu.memory_space<vmem>>, vector<1x128xf32>
    %4 = vector.broadcast %3 : vector<1x128xf32> to vector<16x128xf32>
    %5 = arith.addf %2, %4 : vector<16x128xf32>
    %cst_5 = arith.constant 0.000000e+00 : f32
    %6 = vector.broadcast %cst_5 : f32 to vector<16x128xf32>
    %7 = arith.subf %6, %5 : vector<16x128xf32>
    %8 = math.exp %7 : vector<16x128xf32>
    %cst_6 = arith.constant 1.000000e+00 : f32
    %9 = vector.broadcast %cst_6 : f32 to vector<16x128xf32>
    %10 = arith.addf %9, %8 : vector<16x128xf32>
    %11 = tpu.reciprocal %10 {approx = true} : vector<16x128xf32> -> vector<16x128xf32>
    %c0_7 = arith.constant 0 : index
    %c0_8 = arith.constant 0 : index
    %12 = vector.load %arg5[%c0_7, %c0_8] : memref<16x128xf32, #tpu.memory_space<vmem>>, vector<16x128xf32>
    tpu.vector_store %arg5[%c0_7, %c0_8], %11 {strides = array<i32>} : memref<16x128xf32, #tpu.memory_space<vmem>>, vector<16x128xf32>,
    return
  }
  func.func @transform_0(%arg0: i32, %arg1: i32) -> (i32, i32) {
    %c0_i32 = arith.constant 0 : i32
    %c0_i32_0 = arith.constant 0 : i32
    return %arg1, %c0_i32 : i32, i32
  }
  func.func @transform_1(%arg0: i32, %arg1: i32) -> (i32, i32) {
    %c0_i32 = arith.constant 0 : i32
    %c0_i32_0 = arith.constant 0 : i32
    return %c0_i32, %arg0 : i32, i32
  }
  func.func @transform_2(%arg0: i32, %arg1: i32) -> (i32, i32) {
    %c0_i32 = arith.constant 0 : i32
    %c0_i32_0 = arith.constant 0 : i32
    return %c0_i32, %arg0 : i32, i32
  }
  func.func @transform_3(%arg0: i32, %arg1: i32) -> (i32, i32) {
    %c0_i32 = arith.constant 0 : i32
    return %arg1, %arg0 : i32, i32
  }
}

</mosaic_0001>

<llo_original>
// kernel: output_layer_forward_prepared.1
$region0: #{output_layer_forward_prepared.1}
  #allocation0 [shape = 'u32[]', space=smem, size = 0x4, offset = 0x4, fixed_abs, tag = 'smem constant byte address 0x4 - core index']
  #allocation1 [shape = 'u32[72,128]{1,0:T(1,128)}', space=vmem, size = 0x9000, scoped, tag = 'internal scratch']
  %s0 = inlined_call_operand.vmem [shape: bf16[16,32], index: 0, kind: input, shape index: {}]
  %s1 = inlined_call_operand.vmem [shape: bf16[32,128], index: 1, kind: input, shape index: {}]
  %s2 = inlined_call_operand.vmem [shape: f32[1,128], index: 2, kind: input, shape index: {}]
  %s3 = inlined_call_operand.hbm [shape: f32[16,128], index: 3, kind: output, shape index: {}]
  %s4 = sld [smem:[#allocation0]]
  $region22: #{output_layer_forward_prepared.1} parent=0
    _
  %s6 = ssub.s32 1, %s4
  %s7 = scalar_select 0, %s6, %s4
  $region1: #{output_layer_forward_prepared.1} parent=0
    #allocation2 [shape = 'u8[8192]{0}', space=vmem, size = 0x2000, scoped, tag = 'output window, operand 0, single buffered']
    #allocation3 [shape = 's32[1]{0}', space=sflag, size = 0x4, scoped, tag = 'scoped memory for output_layer_forward_prepared.1']
    %8 = vsyncpa [#allocation3], 0
    // Predicated region
    $region2: #{output_layer_forward_prepared.1} parent=1 // pred_check
      _
    $region3: #{output_layer_forward_prepared.1} parent=1 // pred_check_branch
      %10 = sbr.rel (0) target = $region5
    $region4: #{output_layer_forward_prepared.1} parent=1 // pred_region
      _
    $region5: #{output_layer_forward_prepared.1} parent=1 // pred_fallthru
      _
    // Predicated region
    $region6: #{output_layer_forward_prepared.1} parent=1 // pred_check
      _
    $region7: #{output_layer_forward_prepared.1} parent=1 // pred_check_branch
      %12 = sbr.rel (0) target = $region9
    $region8: #{output_layer_forward_prepared.1} parent=1 // pred_region
      _
    $region9: #{output_layer_forward_prepared.1} parent=1 // pred_fallthru
      _
    // Predicated region
    $region10: #{output_layer_forward_prepared.1} parent=1 // pred_check
      _
    $region11: #{output_layer_forward_prepared.1} parent=1 // pred_check_branch
      %14 = sbr.rel (0) target = $region13
    $region12: #{output_layer_forward_prepared.1} parent=1 // pred_region
      _
    $region13: #{output_layer_forward_prepared.1} parent=1 // pred_fallthru
      _
    %v16 = vld [vmem:[%s0] sm:$0xf]
    %v17 = vld [vmem:[%s0 + $0x4] sm:$0xf]
    %v18 = vld [vmem:[%s1] sm:$0xf]
    %v19 = vld [vmem:[%s1 + $0x4] sm:$0xf]
    %v20 = vld [vmem:[%s1 + $0x8] sm:$0xf]
    %v21 = vld [vmem:[%s1 + $0xc] sm:$0xf]
    %v22 = vld [vmem:[%s2] sm:$0x1]
    %v24 = vperm.slane %v22, 0
    %v28 = vunpack.c.l.b16 %v16
    %v29 = vunpack.c.l.b16 %v17
    %v30 = vpack.c.b16 %v29, %v28
    %v35 = vunpack.c.l.b16 %v18
    %v36 = vunpack.c.l.b16 %v19
    %v37 = vunpack.c.l.b16 %v20
    %v38 = vunpack.c.l.b16 %v21
    %v39 = vpack.c.b16 %v36, %v35
    %v40 = vpack.c.b16 %v38, %v37
    %vm43 = vcmask 261120
    %v45 = vsel %vm43, %v30, 0
    %47 = vmatpush.bf16.msra.mxu0 0
    %48 = vmatpush.bf16.msra.mxu0 0
    %49 = vmatpush.bf16.msra.mxu0 0
    %50 = vmatpush.bf16.msra.mxu0 0
    %51 = vmatpush.bf16.msra.mxu0 0
    %52 = vmatpush.bf16.msra.mxu0 0
    %53 = vmatpush.bf16.msra.mxu0 %v40
    %54 = vmatpush.bf16.msra.mxu0 %v39
    %55 = vmatmul.bf16.gmra.mxu0 %v45
    %v56 = vpop.f32.mrf.mxu0
    %v57 = vadd.f32 %v24, %v56
    %v58 = vpop.f32.mrf.mxu0
    %v59 = vadd.f32 %v24, %v58
    %60 = vdwg.mxu0
    %v61 = vsub.f32 0.0, %v57
    %v62 = vsub.f32 0.0, %v59
    %v63 = vmul.f32 %v61, 1.442695
    %v64 = vpow.pop %v63
    %v65 = vmul.f32 %v62, 1.442695
    %v66 = vpow.pop %v65
    %v67 = vadd.f32 %v64, 1.0
    %v68 = vadd.f32 %v66, 1.0
    %v69 = vrcp.pop %v67
    %v70 = vrcp.pop %v68
    %71 = vst [vmem:[#allocation2] sm:$0xff] %v69
    %72 = vst [vmem:[#allocation2 + $0x8] sm:$0xff] %v70
    // Predicated region
    $region14: #{output_layer_forward_prepared.1} parent=1 // pred_check
      _
    $region15: #{output_layer_forward_prepared.1} parent=1 // pred_check_branch
      %74 = sbr.rel (0) target = $region17
    $region16: #{output_layer_forward_prepared.1} parent=1 // pred_region
      %76 = vsyncadd [#allocation3], 0
      %s77 = sshll.u32 [#allocation2], 4
      %s78 = int_to_ptr.vmem [resolvable:$true] %s77
      %s79 = sshll.u32 %s3, 4
      %s80 = int_to_ptr.hbm [resolvable:$true] %s79
      %85 = dma.vmem_to_hbm [thread:$0]  %s78, 256, %s80, [#allocation3], 128, 128, 8
    $region17: #{output_layer_forward_prepared.1} parent=1 // pred_fallthru
      _
    // Predicated region
    $region18: #{output_layer_forward_prepared.1} parent=1 // pred_check
      _
    $region19: #{output_layer_forward_prepared.1} parent=1 // pred_check_branch
      %87 = sbr.rel (0) target = $region21
    $region20: #{output_layer_forward_prepared.1} parent=1 // pred_region
      %89 = dma.done [#allocation3], 256
    $region21: #{output_layer_forward_prepared.1} parent=1 // pred_fallthru
      _
    %90 = vsyncpa [#allocation3], 1

</llo_original>
